<compile_context>
chip_gen: v7x
topology: tpu7x:2x2x1
jax: 0.10.0
libtpu: 0.0.40
codegen_flags: <defaults>
</compile_context>

<pallas_src>
import jax
import jax.numpy as jnp
from jax import lax
from jax.experimental import pallas as pl
from jax.experimental.pallas import tpu as pltpu


# -----------------------------------------------------------------------------
# Fused kernel: Q/K projection + flash-style online softmax + gamma * out + x
# -----------------------------------------------------------------------------
def _fused_attn_kernel(gamma_ref, wq_ref, bq_ref, wk_ref, bk_ref,
                       xq_ref, xk_ref, o_ref,
                       m_sc, l_sc, acc_sc, q_sc):
    j = pl.program_id(2)

    @pl.when(j == 0)
    def _init():
        m_sc[...] = jnp.full(m_sc.shape, -jnp.inf, jnp.float32)
        l_sc[...] = jnp.zeros(l_sc.shape, jnp.float32)
        acc_sc[...] = jnp.zeros(acc_sc.shape, jnp.float32)
        # Q projection for this query block: computed once per i (bf16 MXU inputs,
        # f32 accumulate), stored bf16 in VMEM scratch and reused for every kv step.
        q = jnp.dot(xq_ref[...].astype(jnp.bfloat16), wq_ref[...],
                    preferred_element_type=jnp.float32) + bq_ref[...]
        q_sc[...] = q.astype(jnp.bfloat16)

    # K projection from the x tile that also serves as V (no K stream from HBM).
    xk = xk_ref[...].astype(jnp.bfloat16)                           # (Tk, C) bf16
    k = (jnp.dot(xk, wk_ref[...], preferred_element_type=jnp.float32)
         + bk_ref[...]).astype(jnp.bfloat16)                        # (Tk, C) bf16

    # energy tile (Tq, Tk): bf16 MXU matmul, f32 accumulate (no scaling in ref).
    s = lax.dot_general(q_sc[...], k, (((1,), (1,)), ((), ())),
                        preferred_element_type=jnp.float32)

    # Online softmax (f32 elementwise math; safe on v5e too).
    m_prev = m_sc[...]
    m_new = jnp.maximum(m_prev, jnp.max(s, axis=-1, keepdims=True))
    alpha = jnp.exp(m_prev - m_new)
    p = jnp.exp(s - m_new)
    l_sc[...] = alpha * l_sc[...] + jnp.sum(p, axis=-1, keepdims=True)
    acc_sc[...] = alpha * acc_sc[...] + jnp.dot(
        p.astype(jnp.bfloat16), xk, preferred_element_type=jnp.float32)
    m_sc[...] = m_new

    @pl.when(j == pl.num_programs(2) - 1)
    def _finalize():
        gamma = gamma_ref[0, 0]
        inv_l = pl.reciprocal(l_sc[...], approx=True)   # EUP slot, effectively free
        out = gamma * (acc_sc[...] * inv_l) + xq_ref[...].astype(jnp.float32)
        o_ref[...] = out.astype(o_ref.dtype)


def _flash_vmem_bytes(block_q, block_k, C, x_bytes):
    """Rough VMEM footprint of the fused kernel (double-buffered streams)."""
    w = 2 * C * C * 2                      # wq + wk, bf16, resident
    b = 2 * C * 4                          # biases, f32
    xi = 2 * block_q * C * x_bytes         # x_i stream (Q + residual), 2 buffers
    xj = 2 * block_k * C * x_bytes         # x_j stream (K + V), 2 buffers
    out = 2 * block_q * C * x_bytes        # output tiles, 2 buffers
    scr = block_q * (2 * 4) + block_q * C * (4 + 2)   # m, l, f32 acc, bf16 q
    return w + b + xi + xj + out + scr


def fused_self_attention(xt, wq_t, bq, wk_t, bk, gamma, *, block_q, block_k):
    """xt: (B, N, C) channels-last; returns gamma * softmax(QK^T) @ xt + xt."""
    B, N, C = xt.shape
    assert N % block_q == 0 and N % block_k == 0, (N, block_q, block_k)
    x_bytes = jnp.dtype(xt.dtype).itemsize

    # Keep the deep pipeline inside a v7x-safe VMEM budget (64 MiB physical).
    est = _flash_vmem_bytes(block_q, block_k, C, x_bytes)
    while est > (48 << 20) and block_q % 2 == 0 and block_q > 128:
        block_q //= 2
        est = _flash_vmem_bytes(block_q, block_k, C, x_bytes)
    vmem_limit = int(min(max(est + (8 << 20), 32 << 20), 56 << 20))

    wq_bf = wq_t.astype(jnp.bfloat16)
    wk_bf = wk_t.astype(jnp.bfloat16)

    xq_spec = pl.BlockSpec((None, block_q, C), lambda b, i, j: (b, i, 0))
    xk_spec = pl.BlockSpec((None, block_k, C), lambda b, i, j: (b, j, 0))
    o_spec = pl.BlockSpec((None, block_q, C), lambda b, i, j: (b, i, 0))
    w_spec = pl.BlockSpec((C, C), lambda b, i, j: (0, 0))     # resident across grid
    b_spec = pl.BlockSpec((1, C), lambda b, i, j: (0, 0))     # resident across grid
    gamma_spec = pl.BlockSpec(memory_space=pltpu.MemorySpace.SMEM)

    return pl.pallas_call(
        _fused_attn_kernel,
        out_shape=jax.ShapeDtypeStruct((B, N, C), xt.dtype),
        grid_spec=pltpu.PrefetchScalarGridSpec(
            num_scalar_prefetch=0,
            grid=(B, N // block_q, N // block_k),
            in_specs=[gamma_spec, w_spec, b_spec, w_spec, b_spec, xq_spec, xk_spec],
            out_specs=o_spec,
            scratch_shapes=[
                pltpu.VMEM((block_q, 1), jnp.float32),     # running max m
                pltpu.VMEM((block_q, 1), jnp.float32),     # running denom l
                pltpu.VMEM((block_q, C), jnp.float32),     # f32 output accumulator
                pltpu.VMEM((block_q, C), jnp.bfloat16),    # projected Q tile
            ],
        ),
        compiler_params=pltpu.CompilerParams(
            dimension_semantics=("parallel", "parallel", "arbitrary"),
            vmem_limit_bytes=vmem_limit),
    )(gamma, wq_bf, bq, wk_bf, bk, xt, xt)


# -----------------------------------------------------------------------------
# Module wrapper (parameters + forward)
# -----------------------------------------------------------------------------
class SelfAttnPallas:
    """Pallas-TPU port of the PyTorch Self_Attn module."""

    def __init__(self, key, in_dim):
        kq, kk, kbq, kbk = jax.random.split(key, 4)
        scale = 1.0 / (in_dim ** 0.5)
        # Conv1d(in_dim, in_dim, k=1) weight is (out, in, 1); stored here already
        # transposed to (in, out) so the projection is xt @ w_t + b.
        self.wq_t = jax.random.uniform(kq, (in_dim, in_dim), jnp.float32, -scale, scale)
        self.wk_t = jax.random.uniform(kk, (in_dim, in_dim), jnp.float32, -scale, scale)
        self.bq = jax.random.uniform(kbq, (1, in_dim), jnp.float32, -scale, scale)
        self.bk = jax.random.uniform(kbk, (1, in_dim), jnp.float32, -scale, scale)
        self.gamma = jnp.ones((1, 1), jnp.float32)          # nn.Parameter(torch.ones(1))
        self.in_dim = in_dim

    @staticmethod
    def _pick_block(n, target):
        """Largest divisor of n that is <= target, preferring multiples of 128."""
        if n <= target:
            return n
        start = target - (target % 128)
        for d in range(start, 127, -128):
            if d > 0 and n % d == 0:
                return d
        for d in range(target, 0, -1):
            if n % d == 0:
                return d
        return n

    def __call__(self, x, *, block_q=None, block_k=None):
        """x: (B, C, N) -> out: (B, C, N) = gamma * x @ softmax(Q^T K)^T + x."""
        B, C, N = x.shape
        auto_q = block_q is None
        block_q = block_q or self._pick_block(N, 512)
        block_k = block_k or self._pick_block(N, 256)
        if auto_q and B * (N // block_q) < 2:
            # v7x has 2 TensorCores; make sure the parallel grid axes carry >=2 blocks.
            for d in range(block_q // 2, 0, -1):
                if N % d == 0:
                    block_q = d
                    break
        # TODO(synk): keep the surrounding model channels-last (or fold this layout
        # change into the kernel) to avoid two full-HBM transposes of x.
        xt = jnp.transpose(x, (0, 2, 1))                    # (B, N, C), channels on lanes
        out_t = fused_self_attention(xt, self.wq_t, self.bq, self.wk_t, self.bk,
                                     self.gamma, block_q=block_q, block_k=block_k)
        return jnp.transpose(out_t, (0, 2, 1))              # back to (B, C, N)


# -----------------------------------------------------------------------------
# Pure-JAX reference (for correctness check)
# -----------------------------------------------------------------------------
def self_attn_reference(x, wq_t, bq, wk_t, bk, gamma):
    xt = jnp.transpose(x, (0, 2, 1))                        # (B, N, C)
    q = jnp.einsum("bnc,cd->bnd", xt, wq_t) + bq
    k = jnp.einsum("bnc,cd->bnd", xt, wk_t) + bk
    energy = jnp.einsum("bic,bjc->bij", q, k)               # (B, N, N)
    attn = jax.nn.softmax(energy, axis=-1)
    out_t = gamma * jnp.einsum("bij,bjc->bic", attn, xt) + xt
    return jnp.transpose(out_t, (0, 2, 1))


if __name__ == "__main__":
    key = jax.random.PRNGKey(0)
    k_model, k_x = jax.random.split(key)

    # small shapes: batch=2, channels (in_dim)=32, number of patches N=64
    B, C, N = 2, 32, 64
    x = jax.random.normal(k_x, (B, C, N), jnp.float32)

    model = SelfAttnPallas(k_model, in_dim=C)
    # Non-trivial residual scale so the gamma path is actually exercised by the check.
    model.gamma = jnp.full((1, 1), 0.75, jnp.float32)

    # Small explicit blocks so the test runs a real multi-step grid:
    # attention grid (2, 2, 2) with 2 online-softmax kv steps per query block,
    # exercising the fused per-block Q projection and the per-step K projection.
    out = model(x, block_q=32, block_k=32)
    out = jax.block_until_ready(out)
    assert out.shape == (B, C, N)

    ref = self_attn_reference(x, model.wq_t, model.bq, model.wk_t, model.bk, model.gamma)
    max_err = float(jnp.max(jnp.abs(out - ref)))
    # bf16 MXU inputs with f32 accumulation typically land around ~1e-2 here.
    assert jnp.allclose(out, ref, rtol=4e-2, atol=4e-2), f"max abs err {max_err}"

    print("KERNEL_OK")
</pallas_src>

<mosaic_0001>
module attributes {stable_mosaic.version = 11 : i64} {
  func.func @_fused_attn_kernel(%arg0: i32, %arg1: i32, %arg2: i32, %arg3: memref<1x1xf32, #tpu.memory_space<smem>>, %arg4: memref<32x32xbf16, #tpu.memory_space<vmem>>, %arg5: memref<1x32xf32, #tpu.memory_space<vmem>>, %arg6: memref<32x32xbf16, #tpu.memory_space<vmem>>, %arg7: memref<1x32xf32, #tpu.memory_space<vmem>>, %arg8: memref<1x32x32xf32, #tpu.memory_space<vmem>>, %arg9: memref<1x32x32xf32, #tpu.memory_space<vmem>>, %arg10: memref<1x32x32xf32, #tpu.memory_space<vmem>>, %arg11: memref<32x1xf32, #tpu.memory_space<vmem>>, %arg12: memref<32x1xf32, #tpu.memory_space<vmem>>, %arg13: memref<32x32xf32, #tpu.memory_space<vmem>>, %arg14: memref<32x32xbf16, #tpu.memory_space<vmem>>) attributes {dimension_semantics = [#tpu.dimension_semantics<parallel>, #tpu.dimension_semantics<parallel>, #tpu.dimension_semantics<arbitrary>], iteration_bounds = array<i64: 2, 2, 2>, scalar_prefetch = 0 : i64, scratch_operands = 4 : i64, tpu.core_type = #tpu.core_type<tc>, window_params = [{transform_indices = @transform_0, window_bounds = array<i64: 1, 1>}, {pipeline_mode = #tpu.pipeline_mode<synchronous>, transform_indices = @transform_1, window_bounds = array<i64: 32, 32>}, {pipeline_mode = #tpu.pipeline_mode<synchronous>, transform_indices = @transform_2, window_bounds = array<i64: 1, 32>}, {pipeline_mode = #tpu.pipeline_mode<synchronous>, transform_indices = @transform_3, window_bounds = array<i64: 32, 32>}, {pipeline_mode = #tpu.pipeline_mode<synchronous>, transform_indices = @transform_4, window_bounds = array<i64: 1, 32>}, {transform_indices = @transform_5, window_bounds = array<i64: 1, 32, 32>}, {transform_indices = @transform_6, window_bounds = array<i64: 1, 32, 32>}, {transform_indices = @transform_7, window_bounds = array<i64: 1, 32, 32>}]} {
    %c0_i32 = arith.constant 0 : i32
    %0 = arith.cmpi eq, %arg2, %c0_i32 : i32
    %1 = arith.extui %0 : i1 to i32
    %c0_i32_0 = arith.constant 0 : i32
    %2 = arith.cmpi ne, %1, %c0_i32_0 : i32
    scf.if %2 {
      %cst_26 = arith.constant 0xFF800000 : f32
      %40 = vector.broadcast %cst_26 : f32 to vector<32x1xf32>
      %c0_27 = arith.constant 0 : index
      %c0_28 = arith.constant 0 : index
      %41 = vector.load %arg11[%c0_27, %c0_28] : memref<32x1xf32, #tpu.memory_space<vmem>>, vector<32x1xf32>
      tpu.vector_store %arg11[%c0_27, %c0_28], %40 {strides = array<i32>} : memref<32x1xf32, #tpu.memory_space<vmem>>, vector<32x1xf32>,
      %cst_29 = arith.constant 0.000000e+00 : f32
      %42 = vector.broadcast %cst_29 : f32 to vector<32x1xf32>
      %c0_30 = arith.constant 0 : index
      %c0_31 = arith.constant 0 : index
      %43 = vector.load %arg12[%c0_30, %c0_31] : memref<32x1xf32, #tpu.memory_space<vmem>>, vector<32x1xf32>
      tpu.vector_store %arg12[%c0_30, %c0_31], %42 {strides = array<i32>} : memref<32x1xf32, #tpu.memory_space<vmem>>, vector<32x1xf32>,
      %cst_32 = arith.constant 0.000000e+00 : f32
      %44 = vector.broadcast %cst_32 : f32 to vector<32x32xf32>
      %c0_33 = arith.constant 0 : index
      %c0_34 = arith.constant 0 : index
      %45 = vector.load %arg13[%c0_33, %c0_34] : memref<32x32xf32, #tpu.memory_space<vmem>>, vector<32x32xf32>
      tpu.vector_store %arg13[%c0_33, %c0_34], %44 {strides = array<i32>} : memref<32x32xf32, #tpu.memory_space<vmem>>, vector<32x32xf32>,
      %c0_35 = arith.constant 0 : index
      %c0_36 = arith.constant 0 : index
      %c0_37 = arith.constant 0 : index
      %46 = vector.load %arg8[%c0_35, %c0_36, %c0_37] : memref<1x32x32xf32, #tpu.memory_space<vmem>>, vector<1x32x32xf32>
      %47 = vector.shape_cast %46 : vector<1x32x32xf32> to vector<32x32xf32>
      %48 = arith.truncf %47 : vector<32x32xf32> to vector<32x32xbf16>
      %c0_38 = arith.constant 0 : index
      %c0_39 = arith.constant 0 : index
      %49 = vector.load %arg4[%c0_38, %c0_39] : memref<32x32xbf16, #tpu.memory_space<vmem>>, vector<32x32xbf16>
      %cst_40 = arith.constant dense<0.000000e+00> : vector<32x32xf32>
      %50 = tpu.matmul %48, %49, %cst_40 {dimension_numbers = #tpu.dot_dimension_numbers<[1], [0], [0], [1], [0, 0, 1, 1], [], []>} : vector<32x32xbf16>, vector<32x32xbf16>, vector<32x32xf32> -> vector<32x32xf32>
      %c0_41 = arith.constant 0 : index
      %c0_42 = arith.constant 0 : index
      %51 = vector.load %arg5[%c0_41, %c0_42] : memref<1x32xf32, #tpu.memory_space<vmem>>, vector<1x32xf32>
      %52 = vector.broadcast %51 : vector<1x32xf32> to vector<32x32xf32>
      %53 = arith.addf %50, %52 : vector<32x32xf32>
      %54 = arith.truncf %53 : vector<32x32xf32> to vector<32x32xbf16>
      %c0_43 = arith.constant 0 : index
      %c0_44 = arith.constant 0 : index
      %55 = vector.load %arg14[%c0_43, %c0_44] : memref<32x32xbf16, #tpu.memory_space<vmem>>, vector<32x32xbf16>
      tpu.vector_store %arg14[%c0_43, %c0_44], %54 {strides = array<i32>} : memref<32x32xbf16, #tpu.memory_space<vmem>>, vector<32x32xbf16>,
    } else {
    }
    %c0 = arith.constant 0 : index
    %c0_1 = arith.constant 0 : index
    %c0_2 = arith.constant 0 : index
    %3 = vector.load %arg9[%c0, %c0_1, %c0_2] : memref<1x32x32xf32, #tpu.memory_space<vmem>>, vector<1x32x32xf32>
    %4 = vector.shape_cast %3 : vector<1x32x32xf32> to vector<32x32xf32>
    %5 = arith.truncf %4 : vector<32x32xf32> to vector<32x32xbf16>
    %c0_3 = arith.constant 0 : index
    %c0_4 = arith.constant 0 : index
    %6 = vector.load %arg6[%c0_3, %c0_4] : memref<32x32xbf16, #tpu.memory_space<vmem>>, vector<32x32xbf16>
    %cst = arith.constant dense<0.000000e+00> : vector<32x32xf32>
    %7 = tpu.matmul %5, %6, %cst {dimension_numbers = #tpu.dot_dimension_numbers<[1], [0], [0], [1], [0, 0, 1, 1], [], []>} : vector<32x32xbf16>, vector<32x32xbf16>, vector<32x32xf32> -> vector<32x32xf32>
    %c0_5 = arith.constant 0 : index
    %c0_6 = arith.constant 0 : index
    %8 = vector.load %arg7[%c0_5, %c0_6] : memref<1x32xf32, #tpu.memory_space<vmem>>, vector<1x32xf32>
    %9 = vector.broadcast %8 : vector<1x32xf32> to vector<32x32xf32>
    %10 = arith.addf %7, %9 : vector<32x32xf32>
    %11 = arith.truncf %10 : vector<32x32xf32> to vector<32x32xbf16>
    %c0_7 = arith.constant 0 : index
    %c0_8 = arith.constant 0 : index
    %12 = vector.load %arg14[%c0_7, %c0_8] : memref<32x32xbf16, #tpu.memory_space<vmem>>, vector<32x32xbf16>
    %cst_9 = arith.constant dense<0.000000e+00> : vector<32x32xf32>
    %13 = tpu.matmul %12, %11, %cst_9 {dimension_numbers = #tpu.dot_dimension_numbers<[1], [1], [0], [0], [0, 0, 1, 0], [], []>} : vector<32x32xbf16>, vector<32x32xbf16>, vector<32x32xf32> -> vector<32x32xf32>
    %c0_10 = arith.constant 0 : index
    %c0_11 = arith.constant 0 : index
    %14 = vector.load %arg11[%c0_10, %c0_11] : memref<32x1xf32, #tpu.memory_space<vmem>>, vector<32x1xf32>
    %cst_12 = arith.constant dense<0xFF800000> : vector<32xf32>
    %15 = vector.multi_reduction <maximumf>, %13, %cst_12 [1] : vector<32x32xf32> to vector<32xf32>
    %16 = vector.shape_cast %15 : vector<32xf32> to vector<32x1xf32>
    %17 = arith.maximumf %14, %16 : vector<32x1xf32>
    %18 = arith.subf %14, %17 : vector<32x1xf32>
    %19 = math.exp %18 : vector<32x1xf32>
    %20 = vector.broadcast %17 : vector<32x1xf32> to vector<32x32xf32>
    %21 = arith.subf %13, %20 : vector<32x32xf32>
    %22 = math.exp %21 : vector<32x32xf32>
    %c0_13 = arith.constant 0 : index
    %c0_14 = arith.constant 0 : index
    %23 = vector.load %arg12[%c0_13, %c0_14] : memref<32x1xf32, #tpu.memory_space<vmem>>, vector<32x1xf32>
    %24 = arith.mulf %19, %23 : vector<32x1xf32>
    %cst_15 = arith.constant dense<0.000000e+00> : vector<32xf32>
    %25 = vector.multi_reduction <add>, %22, %cst_15 [1] : vector<32x32xf32> to vector<32xf32>
    %26 = vector.shape_cast %25 : vector<32xf32> to vector<32x1xf32>
    %27 = arith.addf %24, %26 : vector<32x1xf32>
    %c0_16 = arith.constant 0 : index
    %c0_17 = arith.constant 0 : index
    %28 = vector.load %arg12[%c0_16, %c0_17] : memref<32x1xf32, #tpu.memory_space<vmem>>, vector<32x1xf32>
    tpu.vector_store %arg12[%c0_16, %c0_17], %27 {strides = array<i32>} : memref<32x1xf32, #tpu.memory_space<vmem>>, vector<32x1xf32>,
    %c0_18 = arith.constant 0 : index
    %c0_19 = arith.constant 0 : index
    %29 = vector.load %arg13[%c0_18, %c0_19] : memref<32x32xf32, #tpu.memory_space<vmem>>, vector<32x32xf32>
    %30 = vector.broadcast %19 : vector<32x1xf32> to vector<32x32xf32>
    %31 = arith.mulf %30, %29 : vector<32x32xf32>
    %32 = arith.truncf %22 : vector<32x32xf32> to vector<32x32xbf16>
    %cst_20 = arith.constant dense<0.000000e+00> : vector<32x32xf32>
    %33 = tpu.matmul %32, %5, %cst_20 {dimension_numbers = #tpu.dot_dimension_numbers<[1], [0], [0], [1], [0, 0, 1, 1], [], []>} : vector<32x32xbf16>, vector<32x32xbf16>, vector<32x32xf32> -> vector<32x32xf32>
    %34 = arith.addf %31, %33 : vector<32x32xf32>
    %c0_21 = arith.constant 0 : index
    %c0_22 = arith.constant 0 : index
    %35 = vector.load %arg13[%c0_21, %c0_22] : memref<32x32xf32, #tpu.memory_space<vmem>>, vector<32x32xf32>
    tpu.vector_store %arg13[%c0_21, %c0_22], %34 {strides = array<i32>} : memref<32x32xf32, #tpu.memory_space<vmem>>, vector<32x32xf32>,
    %c0_23 = arith.constant 0 : index
    %c0_24 = arith.constant 0 : index
    %36 = vector.load %arg11[%c0_23, %c0_24] : memref<32x1xf32, #tpu.memory_space<vmem>>, vector<32x1xf32>
    tpu.vector_store %arg11[%c0_23, %c0_24], %17 {strides = array<i32>} : memref<32x1xf32, #tpu.memory_space<vmem>>, vector<32x1xf32>,
    %c1_i32 = arith.constant 1 : i32
    %37 = arith.cmpi eq, %arg2, %c1_i32 : i32
    %38 = arith.extui %37 : i1 to i32
    %c0_i32_25 = arith.constant 0 : i32
    %39 = arith.cmpi ne, %38, %c0_i32_25 : i32
    scf.if %39 {
      %c0_26 = arith.constant 0 : index
      %c0_27 = arith.constant 0 : index
      %40 = memref.load %arg3[%c0_26, %c0_27] : memref<1x1xf32, #tpu.memory_space<smem>>
      %c0_28 = arith.constant 0 : index
      %c0_29 = arith.constant 0 : index
      %41 = vector.load %arg12[%c0_28, %c0_29] : memref<32x1xf32, #tpu.memory_space<vmem>>, vector<32x1xf32>
      %42 = tpu.reciprocal %41 {approx = true} : vector<32x1xf32> -> vector<32x1xf32>
      %c0_30 = arith.constant 0 : index
      %c0_31 = arith.constant 0 : index
      %43 = vector.load %arg13[%c0_30, %c0_31] : memref<32x32xf32, #tpu.memory_space<vmem>>, vector<32x32xf32>
      %44 = vector.broadcast %42 : vector<32x1xf32> to vector<32x32xf32>
      %45 = arith.mulf %43, %44 : vector<32x32xf32>
      %46 = vector.broadcast %40 : f32 to vector<32x32xf32>
      %47 = arith.mulf %46, %45 : vector<32x32xf32>
      %c0_32 = arith.constant 0 : index
      %c0_33 = arith.constant 0 : index
      %c0_34 = arith.constant 0 : index
      %48 = vector.load %arg8[%c0_32, %c0_33, %c0_34] : memref<1x32x32xf32, #tpu.memory_space<vmem>>, vector<1x32x32xf32>
      %49 = vector.shape_cast %48 : vector<1x32x32xf32> to vector<32x32xf32>
      %50 = arith.addf %47, %49 : vector<32x32xf32>
      %c0_35 = arith.constant 0 : index
      %c0_36 = arith.constant 0 : index
      %c0_37 = arith.constant 0 : index
      %51 = vector.load %arg10[%c0_35, %c0_36, %c0_37] : memref<1x32x32xf32, #tpu.memory_space<vmem>>, vector<1x32x32xf32>
      %52 = vector.shape_cast %51 : vector<1x32x32xf32> to vector<32x32xf32>
      %53 = vector.shape_cast %50 : vector<32x32xf32> to vector<1x32x32xf32>
      tpu.vector_store %arg10[%c0_35, %c0_36, %c0_37], %53 {strides = array<i32>} : memref<1x32x32xf32, #tpu.memory_space<vmem>>, vector<1x32x32xf32>,
    } else {
    }
    return
  }
  func.func @transform_0(%arg0: i32, %arg1: i32, %arg2: i32) -> (i32, i32) {
    %c0_i32 = arith.constant 0 : i32
    %c0_i32_0 = arith.constant 0 : i32
    %c0_i32_1 = arith.constant 0 : i32
    return %c0_i32, %c0_i32_0 : i32, i32
  }
  func.func @transform_1(%arg0: i32, %arg1: i32, %arg2: i32) -> (i32, i32) {
    %c0_i32 = arith.constant 0 : i32
    %c0_i32_0 = arith.constant 0 : i32
    %c0_i32_1 = arith.constant 0 : i32
    return %c0_i32, %c0_i32_0 : i32, i32
  }
  func.func @transform_2(%arg0: i32, %arg1: i32, %arg2: i32) -> (i32, i32) {
    %c0_i32 = arith.constant 0 : i32
    %c0_i32_0 = arith.constant 0 : i32
    %c0_i32_1 = arith.constant 0 : i32
    return %c0_i32, %c0_i32_0 : i32, i32
  }
  func.func @transform_3(%arg0: i32, %arg1: i32, %arg2: i32) -> (i32, i32) {
    %c0_i32 = arith.constant 0 : i32
    %c0_i32_0 = arith.constant 0 : i32
    %c0_i32_1 = arith.constant 0 : i32
    return %c0_i32, %c0_i32_0 : i32, i32
  }
  func.func @transform_4(%arg0: i32, %arg1: i32, %arg2: i32) -> (i32, i32) {
    %c0_i32 = arith.constant 0 : i32
    %c0_i32_0 = arith.constant 0 : i32
    %c0_i32_1 = arith.constant 0 : i32
    return %c0_i32, %c0_i32_0 : i32, i32
  }
  func.func @transform_5(%arg0: i32, %arg1: i32, %arg2: i32) -> (i32, i32, i32) {
    %c0_i32 = arith.constant 0 : i32
    %c0_i32_0 = arith.constant 0 : i32
    return %arg0, %arg1, %c0_i32 : i32, i32, i32
  }
  func.func @transform_6(%arg0: i32, %arg1: i32, %arg2: i32) -> (i32, i32, i32) {
    %c0_i32 = arith.constant 0 : i32
    %c0_i32_0 = arith.constant 0 : i32
    return %arg0, %arg2, %c0_i32 : i32, i32, i32
  }
  func.func @transform_7(%arg0: i32, %arg1: i32, %arg2: i32) -> (i32, i32, i32) {
    %c0_i32 = arith.constant 0 : i32
    %c0_i32_0 = arith.constant 0 : i32
    return %arg0, %arg1, %c0_i32 : i32, i32, i32
  }
}

</mosaic_0001>

<llo_original>
// kernel: tpu_custom_call.1
$region0: #{tpu_custom_call.1}
  #allocation0 [shape = 'u32[]', space=smem, size = 0x4, offset = 0x4, fixed_abs, tag = 'smem constant byte address 0x4 - core index']
  #allocation1 [shape = 'u32[144,128]{1,0:T(1,128)}', space=vmem, size = 0x12000, scoped, tag = 'internal scratch']
  #allocation2 [shape = 'f32[32,1]{1,0:T(8,128)}', space=vmem, size = 0x4000, scoped, tag = 'scratch operand']
  #allocation3 [shape = 'f32[32,1]{1,0:T(8,128)}', space=vmem, size = 0x4000, scoped, tag = 'scratch operand']
  #allocation4 [shape = 'f32[32,32]{1,0:T(8,128)}', space=vmem, size = 0x4000, scoped, tag = 'scratch operand']
  #allocation5 [shape = 'bf16[32,32]{1,0:T(16,128)(2,1)}', space=vmem, size = 0x2000, scoped, tag = 'scratch operand']
  #allocation6 [shape = 'f32[1,1]{1,0:T(1,128)S(6)}', space=smem, size = 0x200, scoped, tag = 'scoped memory for tpu_custom_call.1']
  %s0 = inlined_call_operand.<no memory space> [shape: f32[1,1], index: 0, kind: input, shape index: {}]
  %s1 = inlined_call_operand.vmem [shape: bf16[32,32], index: 1, kind: input, shape index: {}]
  %s2 = inlined_call_operand.vmem [shape: f32[1,32], index: 2, kind: input, shape index: {}]
  %s3 = inlined_call_operand.vmem [shape: bf16[32,32], index: 3, kind: input, shape index: {}]
  %s4 = inlined_call_operand.vmem [shape: f32[1,32], index: 4, kind: input, shape index: {}]
  %s5 = inlined_call_operand.vmem [shape: f32[2,64,32], index: 5, kind: input, shape index: {}]
  %s6 = inlined_call_operand.vmem [shape: f32[2,64,32], index: 6, kind: input, shape index: {}]
  %s7 = inlined_call_operand.vmem [shape: f32[2,64,32], index: 7, kind: output, shape index: {}]
  %s8 = sld [smem:[#allocation0]]
  $region69: #{tpu_custom_call.1} parent=0
    _
  %s10 = ssub.s32 1, %s8
  %s11 = scalar_select 0, %s10, %s8
  %12 = sst [smem:[#allocation6]] %s0
  loop: start=0, step=1, limit=10
  $region2: #{tpu_custom_call.1} parent=0 // loop_pre_header
    _
  $region3: #{tpu_custom_call.1} parent=0 // loop_header
    %s14 = sphi 0, %s18
    %p15 = scmp.ge.s32.totalorder %s14, 10
    %s21 = sphi 0, %s40
    %s22 = sphi 0, %s36
    %s23 = sphi 0, %s32
    %s24 = sphi 0, %s21
    %s25 = sphi 0, %s22
    %s26 = sphi 0, %s23
    %s27 = sphi 0, %s24
    %s28 = sphi 0, %s25
    %s29 = sphi 0, %s26
    %s41 = sphi 0, %s41
    %s43 = sphi 0, %s41
    %s44 = sphi 0, %s43
    %s58 = sphi 0, %s44
    %s62 = sphi 0, %s62
    %s64 = sphi 0, %s62
    %s65 = sphi 0, %s64
    %s79 = sphi 0, %s65
    %s83 = sphi 0, %s83
    %s85 = sphi 0, %s83
    %s86 = sphi 0, %s85
    %s100 = sphi 0, %s86
    %s104 = sphi 0, %s104
    %s106 = sphi 0, %s104
    %s107 = sphi 0, %s106
    %s121 = sphi 0, %s107
    %s125 = sphi 0, %s125
    %s127 = sphi 0, %s125
    %s128 = sphi 0, %s127
    %s142 = sphi 0, %s128
    %s150 = sphi 0, %s152
    %s153 = sphi 0, %s150
    %s154 = sphi 0, %s153
    %s170 = sphi 0, %s154
    %s178 = sphi 0, %s180
    %s181 = sphi 0, %s178
    %s182 = sphi 0, %s181
    %s198 = sphi 0, %s182
    %s206 = sphi 0, %s208
    %s209 = sphi 0, %s206
    %s210 = sphi 0, %s209
    %s226 = sphi 0, %s210
  $region4: #{tpu_custom_call.1} parent=0 // loop_header_branch
    %17 = sbr.rel (%p15) target = $region8
  $region5: #{tpu_custom_call.1} parent=0 // loop_body
    %s19 = ssub.s32 %s14, 1
    %s20 = ssub.s32 %s14, 2
    %s30 = sadd.s32 1, %s23
    %p31 = scmp.ge.s32.totalorder %s30, 2
    %s32 = scalar_select %p31, 0, %s30
    %s33 = sadd.s32 1, %s22
    %s34 = scalar_select %p31, %s33, %s22
    %p35 = scmp.ge.s32.totalorder %s34, 2
    %s36 = scalar_select %p35, 0, %s34
    %s37 = sadd.s32 1, %s21
    %s38 = scalar_select %p35, %s37, %s21
    %p39 = scmp.ge.s32.totalorder %s38, 2
    %s40 = scalar_select %p39, 0, %s38
    %s42 = sadd.s32 %s41, 1
    %p45 = scmp.eq.s32.totalorder %s14, 7
    %p46 = scmp.ne.s32.totalorder %s41, %s43
    %p47 = scmp.eq.s32.totalorder %s14, 0
    %p48 = por %p46, %p47
    %p49 = scmp.ne.s32.totalorder %s41, %s43
    %p50 = scmp.eq.s32.totalorder %s19, 7
    %p51 = por %p49, %p50
    %p52 = scmp.ne.s32.totalorder %s43, %s44
    %p53 = scmp.eq.s32.totalorder %s19, 0
    %p54 = por %p52, %p53
    %p55 = scmp.ne.s32.totalorder %s43, %s44
    %p56 = scmp.eq.s32.totalorder %s20, 7
    %p57 = por %p55, %p56
    %p59 = scmp.ne.s32.totalorder %s44, %s58
    %p60 = scmp.eq.s32.totalorder %s20, 0
    %p61 = por %p59, %p60
    %s63 = sadd.s32 %s62, 1
    %p66 = scmp.eq.s32.totalorder %s14, 7
    %p67 = scmp.ne.s32.totalorder %s62, %s64
    %p68 = scmp.eq.s32.totalorder %s14, 0
    %p69 = por %p67, %p68
    %p70 = scmp.ne.s32.totalorder %s62, %s64
    %p71 = scmp.eq.s32.totalorder %s19, 7
    %p72 = por %p70, %p71
    %p73 = scmp.ne.s32.totalorder %s64, %s65
    %p74 = scmp.eq.s32.totalorder %s19, 0
    %p75 = por %p73, %p74
    %p76 = scmp.ne.s32.totalorder %s64, %s65
    %p77 = scmp.eq.s32.totalorder %s20, 7
    %p78 = por %p76, %p77
    %p80 = scmp.ne.s32.totalorder %s65, %s79
    %p81 = scmp.eq.s32.totalorder %s20, 0
    %p82 = por %p80, %p81
    %s84 = sadd.s32 %s83, 1
    %p87 = scmp.eq.s32.totalorder %s14, 7
    %p88 = scmp.ne.s32.totalorder %s83, %s85
    %p89 = scmp.eq.s32.totalorder %s14, 0
    %p90 = por %p88, %p89
    %p91 = scmp.ne.s32.totalorder %s83, %s85
    %p92 = scmp.eq.s32.totalorder %s19, 7
    %p93 = por %p91, %p92
    %p94 = scmp.ne.s32.totalorder %s85, %s86
    %p95 = scmp.eq.s32.totalorder %s19, 0
    %p96 = por %p94, %p95
    %p97 = scmp.ne.s32.totalorder %s85, %s86
    %p98 = scmp.eq.s32.totalorder %s20, 7
    %p99 = por %p97, %p98
    %p101 = scmp.ne.s32.totalorder %s86, %s100
    %p102 = scmp.eq.s32.totalorder %s20, 0
    %p103 = por %p101, %p102
    %s105 = sadd.s32 %s104, 1
    %p108 = scmp.eq.s32.totalorder %s14, 7
    %p109 = scmp.ne.s32.totalorder %s104, %s106
    %p110 = scmp.eq.s32.totalorder %s14, 0
    %p111 = por %p109, %p110
    %p112 = scmp.ne.s32.totalorder %s104, %s106
    %p113 = scmp.eq.s32.totalorder %s19, 7
    %p114 = por %p112, %p113
    %p115 = scmp.ne.s32.totalorder %s106, %s107
    %p116 = scmp.eq.s32.totalorder %s19, 0
    %p117 = por %p115, %p116
    %p118 = scmp.ne.s32.totalorder %s106, %s107
    %p119 = scmp.eq.s32.totalorder %s20, 7
    %p120 = por %p118, %p119
    %p122 = scmp.ne.s32.totalorder %s107, %s121
    %p123 = scmp.eq.s32.totalorder %s20, 0
    %p124 = por %p122, %p123
    %s126 = sadd.s32 %s125, 1
    %p129 = scmp.eq.s32.totalorder %s14, 7
    %p130 = scmp.ne.s32.totalorder %s125, %s127
    %p131 = scmp.eq.s32.totalorder %s14, 0
    %p132 = por %p130, %p131
    %p133 = scmp.ne.s32.totalorder %s125, %s127
    %p134 = scmp.eq.s32.totalorder %s19, 7
    %p135 = por %p133, %p134
    %p136 = scmp.ne.s32.totalorder %s127, %s128
    %p137 = scmp.eq.s32.totalorder %s19, 0
    %p138 = por %p136, %p137
    %p139 = scmp.ne.s32.totalorder %s127, %s128
    %p140 = scmp.eq.s32.totalorder %s20, 7
    %p141 = por %p139, %p140
    %p143 = scmp.ne.s32.totalorder %s128, %s142
    %p144 = scmp.eq.s32.totalorder %s20, 0
    %p145 = por %p143, %p144
    %s146 = ssub.s32 %s21, %s40
    %s147 = ssub.s32 %s22, %s36
    %s148 = sor.u32 %s146, %s147
    %p149 = scmp.eq.s32.totalorder %s148, 0
    %s151 = sadd.s32 %s150, 1
    %s152 = scalar_select %p149, %s150, %s151
    %p155 = pneg %p149
    %p156 = scmp.eq.s32.totalorder %s14, 7
    %p157 = por %p155, %p156
    %p158 = scmp.ne.s32.totalorder %s150, %s153
    %p159 = scmp.eq.s32.totalorder %s14, 0
    %p160 = por %p158, %p159
    %p161 = scmp.ne.s32.totalorder %s150, %s153
    %p162 = scmp.eq.s32.totalorder %s19, 7
    %p163 = por %p161, %p162
    %p164 = scmp.ne.s32.totalorder %s153, %s154
    %p165 = scmp.eq.s32.totalorder %s19, 0
    %p166 = por %p164, %p165
    %p167 = scmp.ne.s32.totalorder %s153, %s154
    %p168 = scmp.eq.s32.totalorder %s20, 7
    %p169 = por %p167, %p168
    %p171 = scmp.ne.s32.totalorder %s154, %s170
    %p172 = scmp.eq.s32.totalorder %s20, 0
    %p173 = por %p171, %p172
    %s174 = ssub.s32 %s21, %s40
    %s175 = ssub.s32 %s23, %s32
    %s176 = sor.u32 %s174, %s175
    %p177 = scmp.eq.s32.totalorder %s176, 0
    %s179 = sadd.s32 %s178, 1
    %s180 = scalar_select %p177, %s178, %s179
    %p183 = pneg %p177
    %p184 = scmp.eq.s32.totalorder %s14, 7
    %p185 = por %p183, %p184
    %p186 = scmp.ne.s32.totalorder %s178, %s181
    %p187 = scmp.eq.s32.totalorder %s14, 0
    %p188 = por %p186, %p187
    %p189 = scmp.ne.s32.totalorder %s178, %s181
    %p190 = scmp.eq.s32.totalorder %s19, 7
    %p191 = por %p189, %p190
    %p192 = scmp.ne.s32.totalorder %s181, %s182
    %p193 = scmp.eq.s32.totalorder %s19, 0
    %p194 = por %p192, %p193
    %p195 = scmp.ne.s32.totalorder %s181, %s182
    %p196 = scmp.eq.s32.totalorder %s20, 7
    %p197 = por %p195, %p196
    %p199 = scmp.ne.s32.totalorder %s182, %s198
    %p200 = scmp.eq.s32.totalorder %s20, 0
    %p201 = por %p199, %p200
    %s202 = ssub.s32 %s21, %s40
    %s203 = ssub.s32 %s22, %s36
    %s204 = sor.u32 %s202, %s203
    %p205 = scmp.eq.s32.totalorder %s204, 0
    %s207 = sadd.s32 %s206, 1
    %s208 = scalar_select %p205, %s206, %s207
    %p211 = pneg %p205
    %p212 = scmp.eq.s32.totalorder %s14, 7
    %p213 = por %p211, %p212
    %p214 = scmp.ne.s32.totalorder %s206, %s209
    %p215 = scmp.eq.s32.totalorder %s14, 0
    %p216 = por %p214, %p215
    %p217 = scmp.ne.s32.totalorder %s206, %s209
    %p218 = scmp.eq.s32.totalorder %s19, 7
    %p219 = por %p217, %p218
    %p220 = scmp.ne.s32.totalorder %s209, %s210
    %p221 = scmp.eq.s32.totalorder %s19, 0
    %p222 = por %p220, %p221
    %p223 = scmp.ne.s32.totalorder %s209, %s210
    %p224 = scmp.eq.s32.totalorder %s20, 7
    %p225 = por %p223, %p224
    %p227 = scmp.ne.s32.totalorder %s210, %s226
    %p228 = scmp.eq.s32.totalorder %s20, 0
    %p229 = por %p227, %p228
    %p230 = scmp.le.s32.totalorder 1, %s14
    %p231 = scmp.lt.s32.totalorder %s14, 9
    %p232 = pnand %p230, %p231
    %p233 = pneg %p232
    // Predicated region
    $region9: #{tpu_custom_call.1} parent=5 // pred_check
      _
    $region10: #{tpu_custom_call.1} parent=5 // pred_check_branch
      %235 = sbr.rel (%p232) target = $region12
    $region11: #{tpu_custom_call.1} parent=5 // pred_region
      %s236 = ssub.s32 %s14, 1
      // Predicated region
      $region13: #{tpu_custom_call.1} parent=11 // pred_check
        %p237 = pneg %p54
      $region14: #{tpu_custom_call.1} parent=11 // pred_check_branch
        %239 = sbr.rel (%p237) target = $region16
      $region15: #{tpu_custom_call.1} parent=11 // pred_region
        _
      $region16: #{tpu_custom_call.1} parent=11 // pred_fallthru
        _
      // Predicated region
      $region17: #{tpu_custom_call.1} parent=11 // pred_check
        %p240 = pneg %p75
      $region18: #{tpu_custom_call.1} parent=11 // pred_check_branch
        %242 = sbr.rel (%p240) target = $region20
      $region19: #{tpu_custom_call.1} parent=11 // pred_region
        _
      $region20: #{tpu_custom_call.1} parent=11 // pred_fallthru
        _
      // Predicated region
      $region21: #{tpu_custom_call.1} parent=11 // pred_check
        %p243 = pneg %p96
      $region22: #{tpu_custom_call.1} parent=11 // pred_check_branch
        %245 = sbr.rel (%p243) target = $region24
      $region23: #{tpu_custom_call.1} parent=11 // pred_region
        _
      $region24: #{tpu_custom_call.1} parent=11 // pred_fallthru
        _
      // Predicated region
      $region25: #{tpu_custom_call.1} parent=11 // pred_check
        %p246 = pneg %p117
      $region26: #{tpu_custom_call.1} parent=11 // pred_check_branch
        %248 = sbr.rel (%p246) target = $region28
      $region27: #{tpu_custom_call.1} parent=11 // pred_region
        _
      $region28: #{tpu_custom_call.1} parent=11 // pred_fallthru
        _
      // Predicated region
      $region29: #{tpu_custom_call.1} parent=11 // pred_check
        %p249 = pneg %p138
      $region30: #{tpu_custom_call.1} parent=11 // pred_check_branch
        %251 = sbr.rel (%p249) target = $region32
      $region31: #{tpu_custom_call.1} parent=11 // pred_region
        _
      $region32: #{tpu_custom_call.1} parent=11 // pred_fallthru
        _
    $region12: #{tpu_custom_call.1} parent=5 // pred_fallthru
      _
    %p252 = scmp.lt.s32.totalorder %s14, 8
    // Predicated region
    $region33: #{tpu_custom_call.1} parent=5 // pred_check
      %p253 = pneg %p252
    $region34: #{tpu_custom_call.1} parent=5 // pred_check_branch
      %255 = sbr.rel (%p253) target = $region36
    $region35: #{tpu_custom_call.1} parent=5 // pred_region
      // Predicated region
      $region37: #{tpu_custom_call.1} parent=35 // pred_check
        %p256 = pneg %p160
      $region38: #{tpu_custom_call.1} parent=35 // pred_check_branch
        %258 = sbr.rel (%p256) target = $region40
      $region39: #{tpu_custom_call.1} parent=35 // pred_region
        %s259 = smul.u32 4, %s22
        %p260 = scmp.lt.s32.totalorder %s21, 1
        %s261 = scalar_select %p260, %s21, 1
        %p262 = scmp.lt.s32.totalorder %s259, 7
        %s263 = scalar_select %p262, %s259, 7
        %s264 = smul.addr %s261, 8
        %s265 = sadd.s32 %s263, %s264
        %s266 = smul.addr %s265, 8
        %s267 = scalar_lea.vmem %s5, %s266
        %s268 = smul.u32 4, %s22
      $region40: #{tpu_custom_call.1} parent=35 // pred_fallthru
        _
      // Predicated region
      $region41: #{tpu_custom_call.1} parent=35 // pred_check
        %p269 = pneg %p188
      $region42: #{tpu_custom_call.1} parent=35 // pred_check_branch
        %271 = sbr.rel (%p269) target = $region44
      $region43: #{tpu_custom_call.1} parent=35 // pred_region
        %s272 = smul.u32 4, %s23
        %p273 = scmp.lt.s32.totalorder %s21, 1
        %s274 = scalar_select %p273, %s21, 1
        %p275 = scmp.lt.s32.totalorder %s272, 7
        %s276 = scalar_select %p275, %s272, 7
        %s277 = smul.addr %s274, 8
        %s278 = sadd.s32 %s276, %s277
        %s279 = smul.addr %s278, 8
        %s280 = scalar_lea.vmem %s6, %s279
        %s281 = smul.u32 4, %s23
      $region44: #{tpu_custom_call.1} parent=35 // pred_fallthru
        _
    $region36: #{tpu_custom_call.1} parent=5 // pred_fallthru
      _
    %p282 = scmp.le.s32.totalorder 1, %s14
    %p283 = scmp.lt.s32.totalorder %s14, 9
    %p284 = pnand %p282, %p283
    %p285 = pneg %p284
    // Predicated region
    $region45: #{tpu_custom_call.1} parent=5 // pred_check
      _
    $region46: #{tpu_custom_call.1} parent=5 // pred_check_branch
      %287 = sbr.rel (%p284) target = $region48
    $region47: #{tpu_custom_call.1} parent=5 // pred_region
      %s288 = ssub.s32 %s14, 1
      %p289 = pneg %p54
      %p290 = pneg %p51
      %p291 = pneg %p75
      %p292 = pneg %p72
      %p293 = pneg %p96
      %p294 = pneg %p93
      %p295 = pneg %p117
      %p296 = pneg %p114
      %p297 = pneg %p138
      %p298 = pneg %p135
      %s299 = smul.u32 4, %s25
      %p300 = scmp.lt.s32.totalorder %s24, 1
      %s301 = scalar_select %p300, %s24, 1
      %p302 = scmp.lt.s32.totalorder %s299, 7
      %s303 = scalar_select %p302, %s299, 7
      %s304 = smul.addr %s301, 8
      %s305 = sadd.s32 %s303, %s304
      %s306 = smul.addr %s305, 8
      %s307 = scalar_lea.vmem %s5, %s306
      %p308 = pneg %p166
      %p309 = pneg %p163
      %s310 = smul.u32 4, %s26
      %p311 = scmp.lt.s32.totalorder %s24, 1
      %s312 = scalar_select %p311, %s24, 1
      %p313 = scmp.lt.s32.totalorder %s310, 7
      %s314 = scalar_select %p313, %s310, 7
      %s315 = smul.addr %s312, 8
      %s316 = sadd.s32 %s314, %s315
      %s317 = smul.addr %s316, 8
      %s318 = scalar_lea.vmem %s6, %s317
      %p319 = pneg %p194
      %p320 = pneg %p191
      %p321 = pneg %p222
      %p322 = pneg %p219
      %s323 = smul.u32 4, %s25
      %p324 = scmp.lt.s32.totalorder %s24, 1
      %s325 = scalar_select %p324, %s24, 1
      %p326 = scmp.lt.s32.totalorder %s323, 7
      %s327 = scalar_select %p326, %s323, 7
      %s328 = smul.addr %s325, 8
      %s329 = sadd.s32 %s327, %s328
      %s330 = smul.addr %s329, 8
      %s331 = scalar_lea.vmem %s7, %s330
      %s332 = smul.u32 4, %s25
      %p333 = scmp.lt.s32.totalorder %s24, 1
      %s334 = scalar_select %p333, %s24, 1
      %p335 = scmp.lt.s32.totalorder %s332, 7
      %s336 = scalar_select %p335, %s332, 7
      %s337 = smul.addr %s334, 8
      %s338 = sadd.s32 %s336, %s337
      %s339 = smul.addr %s338, 8
      %s340 = scalar_lea.vmem %s5, %s339
      %s341 = smul.u32 4, %s25
      %s342 = smul.u32 4, %s26
      %p343 = scmp.lt.s32.totalorder %s24, 1
      %s344 = scalar_select %p343, %s24, 1
      %p345 = scmp.lt.s32.totalorder %s342, 7
      %s346 = scalar_select %p345, %s342, 7
      %s347 = smul.addr %s344, 8
      %s348 = sadd.s32 %s346, %s347
      %s349 = smul.addr %s348, 8
      %s350 = scalar_lea.vmem %s6, %s349
      %s351 = smul.u32 4, %s26
      %s352 = smul.u32 4, %s25
      %p353 = scmp.lt.s32.totalorder %s24, 1
      %s354 = scalar_select %p353, %s24, 1
      %p355 = scmp.lt.s32.totalorder %s352, 7
      %s356 = scalar_select %p355, %s352, 7
      %s357 = smul.addr %s354, 8
      %s358 = sadd.s32 %s356, %s357
      %s359 = smul.addr %s358, 8
      %s360 = scalar_lea.vmem %s7, %s359
      %s361 = smul.u32 4, %s25
      %p363 = scmp.eq.s32.totalorder %s26, 0
      // Predicated region
      $region49: #{tpu_custom_call.1} parent=47 // pred_check
        %p364 = pneg %p363
      $region50: #{tpu_custom_call.1} parent=47 // pred_check_branch
        %366 = sbr.rel (%p364) target = $region52
      $region51: #{tpu_custom_call.1} parent=47 // pred_region
        %vm367 = vcmask 7168
        %368 = vst.msk [vmem:[#allocation2] sm:$0xff] %vm367, -inf
        %369 = vst.msk [vmem:[#allocation2 + $0x8] sm:$0xff] %vm367, -inf
        %370 = vst.msk [vmem:[#allocation2 + $0x10] sm:$0xff] %vm367, -inf
        %371 = vst.msk [vmem:[#allocation2 + $0x18] sm:$0xff] %vm367, -inf
        %372 = vst.msk [vmem:[#allocation3] sm:$0xff] %vm367, 0.0
        %373 = vst.msk [vmem:[#allocation3 + $0x8] sm:$0xff] %vm367, 0.0
        %374 = vst.msk [vmem:[#allocation3 + $0x10] sm:$0xff] %vm367, 0.0
        %375 = vst.msk [vmem:[#allocation3 + $0x18] sm:$0xff] %vm367, 0.0
        %vm376 = vcmask 261120
        %377 = vst.msk [vmem:[#allocation4] sm:$0xff] %vm376, 0.0
        %378 = vst.msk [vmem:[#allocation4 + $0x8] sm:$0xff] %vm376, 0.0
        %379 = vst.msk [vmem:[#allocation4 + $0x10] sm:$0xff] %vm376, 0.0
        %380 = vst.msk [vmem:[#allocation4 + $0x18] sm:$0xff] %vm376, 0.0
        %v381 = vld [vmem:[%s340] sm:$0xff]
        %v382 = vld [vmem:[%s340 + $0x8] sm:$0xff]
        %v383 = vld [vmem:[%s340 + $0x10] sm:$0xff]
        %v384 = vld [vmem:[%s340 + $0x18] sm:$0xff]
        %v385 = vpack.c.bf16 %v382, %v381
        %v386 = vpack.c.bf16 %v384, %v383
        %v387 = vld [vmem:[%s1] sm:$0xf]
        %v388 = vld [vmem:[%s1 + $0x4] sm:$0xf]
        %v389 = vld [vmem:[%s1 + $0x8] sm:$0xf]
        %v390 = vld [vmem:[%s1 + $0xc] sm:$0xf]
        %v391 = vld [vmem:[%s2] sm:$0x1]
        %v393 = vlaneseq
        %v394 = vshrl.u32 %v393, 7
        %v395 = vsub.s32 0, %v394
        %v396 = vrot.slane %v391, %v395
        %v402 = vunpack.c.l.b16 %v387
        %v403 = vunpack.c.l.b16 %v388
        %v404 = vunpack.c.l.b16 %v389
        %v405 = vunpack.c.l.b16 %v390
        %v406 = vpack.c.b16 %v403, %v402
        %v407 = vpack.c.b16 %v405, %v404
        %v411 = vsel %vm376, %v385, 0
        %v414 = vsel %vm376, %v386, 0
        %416 = vmatprep.subr.bf16.mxu0 0
        %417 = vmatpush1.bf16.msra.mxu0 %v406
        %418 = vmatprep.subr.bf16.mxu0 0
        %419 = vmatpush1.bf16.msra.mxu0 %v407
        %420 = vmatprep.subr.bf16.mxu0 0
        %421 = vmatpush1.bf16.msra.mxu0 0
        %422 = vmatprep.subr.bf16.mxu0 0
        %423 = vmatpush1.bf16.msra.mxu0 0
        %424 = vmatprep.subr.bf16.mxu0 0
        %425 = vmatpush1.bf16.msra.mxu0 0
        %426 = vmatprep.subr.bf16.mxu0 0
        %427 = vmatpush1.bf16.msra.mxu0 0
        %428 = vmatprep.subr.bf16.mxu0 0
        %429 = vmatpush1.bf16.msra.mxu0 0
        %430 = vmatprep.subr.bf16.mxu0 0
        %431 = vmatpush1.bf16.msra.mxu0 0
        %432 = vmatprep.subr.bf16.mxu0 0
        %433 = vmatpush1.bf16.msra.mxu0 0
        %434 = vmatprep.subr.bf16.mxu0 0
        %435 = vmatpush1.bf16.msra.mxu0 0
        %436 = vmatprep.subr.bf16.mxu0 0
        %437 = vmatpush1.bf16.msra.mxu0 0
        %438 = vmatprep.subr.bf16.mxu0 0
        %439 = vmatpush1.bf16.msra.mxu0 0
        %440 = vmatprep.subr.bf16.mxu0 0
        %441 = vmatpush1.bf16.msra.mxu0 0
        %442 = vmatprep.subr.bf16.mxu0 0
        %443 = vmatpush1.bf16.msra.mxu0 0
        %444 = vmatprep.subr.bf16.mxu0 0
        %445 = vmatpush1.bf16.msra.mxu0 0
        %446 = vmatprep.subr.bf16.mxu0 0
        %447 = vmatpush1.bf16.msra.mxu0 0
        %448 = vmatprep.mubr.bf16.mxu0 0
        %449 = vmatmul.mubr.bf16.gmra.mrb[0].mxu0 %v411
        %v450 = vpop.f32.mrb[0].mxu0
        %v451 = vadd.f32 %v396, %v450
        %v452 = vpop.f32.mrb[0].mxu0
        %v453 = vpop.f32.mrb[0].mxu0
        %v454 = vadd.f32 %v396, %v453
        %v455 = vpop.f32.mrb[0].mxu0
        %456 = vmatprep.mubr.bf16.mxu0 0
        %457 = vmatmul.mubr.bf16.gmra.mrb[0].mxu0 %v414
        %v458 = vpop.f32.mrb[0].mxu0
        %v459 = vadd.f32 %v396, %v458
        %v460 = vpop.f32.mrb[0].mxu0
        %v461 = vpop.f32.mrb[0].mxu0
        %v462 = vadd.f32 %v396, %v461
        %v463 = vpop.f32.mrb[0].mxu0
        %464 = vdwg.mxu0
        %v465 = vpack.c.bf16 %v454, %v451
        %v466 = vpack.c.bf16 %v462, %v459
        %467 = vst.msk [vmem:[#allocation5] sm:$0xff] %vm376, %v465
        %468 = vst.msk [vmem:[#allocation5 + $0x8] sm:$0xff] %vm376, %v466
      $region52: #{tpu_custom_call.1} parent=47 // pred_fallthru
        _
      %v469 = vld [vmem:[%s350] sm:$0xff]
      %v470 = vld [vmem:[%s350 + $0x8] sm:$0xff]
      %v471 = vld [vmem:[%s350 + $0x10] sm:$0xff]
      %v472 = vld [vmem:[%s350 + $0x18] sm:$0xff]
      %v473 = vpack.c.bf16 %v470, %v469
      %v474 = vpack.c.bf16 %v472, %v471
      %v475 = vld [vmem:[%s3] sm:$0xf]
      %v476 = vld [vmem:[%s3 + $0x4] sm:$0xf]
      %v477 = vld [vmem:[%s3 + $0x8] sm:$0xf]
      %v478 = vld [vmem:[%s3 + $0xc] sm:$0xf]
      %v479 = vld [vmem:[%s4] sm:$0x1]
      %v481 = vlaneseq
      %v482 = vshrl.u32 %v481, 7
      %v483 = vsub.s32 0, %v482
      %v484 = vrot.slane %v479, %v483
      %v490 = vunpack.c.l.b16 %v475
      %v491 = vunpack.c.l.b16 %v476
      %v492 = vunpack.c.l.b16 %v477
      %v493 = vunpack.c.l.b16 %v478
      %v494 = vpack.c.b16 %v491, %v490
      %v495 = vpack.c.b16 %v493, %v492
      %vm498 = vcmask 261120
      %v500 = vsel %vm498, %v473, 0
      %v503 = vsel %vm498, %v474, 0
      %505 = vmatprep.subr.bf16.mxu0 0
      %506 = vmatpush1.bf16.msra.mxu0 %v494
      %507 = vmatprep.subr.bf16.mxu0 0
      %508 = vmatpush1.bf16.msra.mxu0 %v495
      %509 = vmatprep.subr.bf16.mxu0 0
      %510 = vmatpush1.bf16.msra.mxu0 0
      %511 = vmatprep.subr.bf16.mxu0 0
      %512 = vmatpush1.bf16.msra.mxu0 0
      %513 = vmatprep.subr.bf16.mxu0 0
      %514 = vmatpush1.bf16.msra.mxu0 0
      %515 = vmatprep.subr.bf16.mxu0 0
      %516 = vmatpush1.bf16.msra.mxu0 0
      %517 = vmatprep.subr.bf16.mxu0 0
      %518 = vmatpush1.bf16.msra.mxu0 0
      %519 = vmatprep.subr.bf16.mxu0 0
      %520 = vmatpush1.bf16.msra.mxu0 0
      %521 = vmatprep.subr.bf16.mxu0 0
      %522 = vmatpush1.bf16.msra.mxu0 0
      %523 = vmatprep.subr.bf16.mxu0 0
      %524 = vmatpush1.bf16.msra.mxu0 0
      %525 = vmatprep.subr.bf16.mxu0 0
      %526 = vmatpush1.bf16.msra.mxu0 0
      %527 = vmatprep.subr.bf16.mxu0 0
      %528 = vmatpush1.bf16.msra.mxu0 0
      %529 = vmatprep.subr.bf16.mxu0 0
      %530 = vmatpush1.bf16.msra.mxu0 0
      %531 = vmatprep.subr.bf16.mxu0 0
      %532 = vmatpush1.bf16.msra.mxu0 0
      %533 = vmatprep.subr.bf16.mxu0 0
      %534 = vmatpush1.bf16.msra.mxu0 0
      %535 = vmatprep.subr.bf16.mxu0 0
      %536 = vmatpush1.bf16.msra.mxu0 0
      %537 = vmatprep.mubr.bf16.mxu0 0
      %538 = vmatmul.mubr.bf16.gmra.mrb[0].mxu0 %v500
      %v539 = vpop.f32.mrb[0].mxu0
      %v540 = vadd.f32 %v484, %v539
      %v541 = vpop.f32.mrb[0].mxu0
      %v542 = vpop.f32.mrb[0].mxu0
      %v543 = vadd.f32 %v484, %v542
      %v544 = vpop.f32.mrb[0].mxu0
      %545 = vmatprep.mubr.bf16.mxu0 0
      %546 = vmatmul.mubr.bf16.gmra.mrb[0].mxu0 %v503
      %v547 = vpop.f32.mrb[0].mxu0
      %v548 = vadd.f32 %v484, %v547
      %v549 = vpop.f32.mrb[0].mxu0
      %v550 = vpop.f32.mrb[0].mxu0
      %v551 = vadd.f32 %v484, %v550
      %v552 = vpop.f32.mrb[0].mxu0
      %553 = vdwg.mxu0
      %v554 = vpack.c.bf16 %v543, %v540
      %v555 = vpack.c.bf16 %v551, %v548
      %v556 = vld [vmem:[#allocation5] sm:$0xff]
      %v557 = vld [vmem:[#allocation5 + $0x8] sm:$0xff]
      %v559 = vsel %vm498, %v556, 0
      %v562 = vsel %vm498, %v557, 0
      %v565 = vsel %vm498, %v554, 0
      %v568 = vsel %vm498, %v555, 0
      %570 = vmatprep.subr.bf16.mxu0 0
      %571 = vmatpush1.bf16.xpose.msra.mxu0 %v565
      %572 = vmatprep.subr.bf16.mxu0 0
      %573 = vmatpush1.bf16.xpose.msra.mxu0 %v568
      %574 = vmatprep.subr.bf16.mxu0 0
      %575 = vmatpush1.bf16.xpose.msra.mxu0 0
      %576 = vmatprep.subr.bf16.mxu0 0
      %577 = vmatpush1.bf16.xpose.msra.mxu0 0
      %578 = vmatprep.subr.bf16.mxu0 0
      %579 = vmatpush1.bf16.xpose.msra.mxu0 0
      %580 = vmatprep.subr.bf16.mxu0 0
      %581 = vmatpush1.bf16.xpose.msra.mxu0 0
      %582 = vmatprep.subr.bf16.mxu0 0
      %583 = vmatpush1.bf16.xpose.msra.mxu0 0
      %584 = vmatprep.subr.bf16.mxu0 0
      %585 = vmatpush1.bf16.xpose.msra.mxu0 0
      %586 = vmatprep.subr.bf16.mxu0 0
      %587 = vmatpush1.bf16.xpose.msra.mxu0 0
      %588 = vmatprep.subr.bf16.mxu0 0
      %589 = vmatpush1.bf16.xpose.msra.mxu0 0
      %590 = vmatprep.subr.bf16.mxu0 0
      %591 = vmatpush1.bf16.xpose.msra.mxu0 0
      %592 = vmatprep.subr.bf16.mxu0 0
      %593 = vmatpush1.bf16.xpose.msra.mxu0 0
      %594 = vmatprep.subr.bf16.mxu0 0
      %595 = vmatpush1.bf16.xpose.msra.mxu0 0
      %596 = vmatprep.subr.bf16.mxu0 0
      %597 = vmatpush1.bf16.xpose.msra.mxu0 0
      %598 = vmatprep.subr.bf16.mxu0 0
      %599 = vmatpush1.bf16.xpose.msra.mxu0 0
      %600 = vmatprep.subr.bf16.mxu0 0
      %601 = vmatpush1.bf16.xpose.msra.mxu0 0
      %602 = vmatprep.mubr.bf16.mxu0 0
      %603 = vmatmul.mubr.bf16.gmra.mrb[0].mxu0 %v559
      %v604 = vpop.f32.mrb[0].mxu0
      %v605 = vadd.f32 0.0, %v604
      %v606 = vpop.f32.mrb[0].mxu0
      %v607 = vpop.f32.mrb[0].mxu0
      %v608 = vadd.f32 0.0, %v607
      %v609 = vpop.f32.mrb[0].mxu0
      %610 = vmatprep.mubr.bf16.mxu0 0
      %611 = vmatmul.mubr.bf16.gmra.mrb[0].mxu0 %v562
      %v612 = vpop.f32.mrb[0].mxu0
      %v613 = vadd.f32 0.0, %v612
      %v614 = vpop.f32.mrb[0].mxu0
      %v615 = vpop.f32.mrb[0].mxu0
      %v616 = vadd.f32 0.0, %v615
      %v617 = vpop.f32.mrb[0].mxu0
      %618 = vdwg.mxu0
      %v619 = vld [vmem:[#allocation2] sm:$0xff]
      %v620 = vld [vmem:[#allocation2 + $0x8] sm:$0xff]
      %v621 = vld [vmem:[#allocation2 + $0x10] sm:$0xff]
      %v622 = vld [vmem:[#allocation2 + $0x18] sm:$0xff]
      %v623 = vsel %vm498, %v605, -inf
      %624 = vmax.xlane.f32.xlu0 %v623
      %v625 = vpop.xlane.xlu0 %624
      %v626 = vsel %vm498, %v608, -inf
      %627 = vmax.xlane.f32.xlu0 %v626
      %v628 = vpop.xlane.xlu0 %627
      %v629 = vsel %vm498, %v613, -inf
      %630 = vmax.xlane.f32.xlu0 %v629
      %v631 = vpop.xlane.xlu0 %630
      %v632 = vsel %vm498, %v616, -inf
      %633 = vmax.xlane.f32.xlu0 %v632
      %v634 = vpop.xlane.xlu0 %633
      %v635 = vmax.f32 %v619, %v625
      %v636 = vmax.f32 %v620, %v628
      %v637 = vmax.f32 %v621, %v631
      %v638 = vmax.f32 %v622, %v634
      %v639 = vsub.f32 %v619, %v635
      %v640 = vsub.f32 %v620, %v636
      %v641 = vsub.f32 %v621, %v637
      %v642 = vsub.f32 %v622, %v638
      %v643 = vmul.f32 %v639, 1.442695
      %v644 = vpow.pop %v643
      %v645 = vmul.f32 %v640, 1.442695
      %v646 = vpow.pop %v645
      %v647 = vmul.f32 %v641, 1.442695
      %v648 = vpow.pop %v647
      %v649 = vmul.f32 %v642, 1.442695
      %v650 = vpow.pop %v649
      %652 = vset.pattern.permute.xlu0 0
      %653 = vperm.xlu0 %652, %v635
      %v654 = vpop.permute.xlu0 %653
      %657 = vset.pattern.permute.xlu0 0
      %658 = vperm.xlu0 %657, %v636
      %v659 = vpop.permute.xlu0 %658
      %662 = vset.pattern.permute.xlu0 0
      %663 = vperm.xlu0 %662, %v637
      %v664 = vpop.permute.xlu0 %663
      %667 = vset.pattern.permute.xlu0 0
      %668 = vperm.xlu0 %667, %v638
      %v669 = vpop.permute.xlu0 %668
      %v671 = vsub.f32 %v605, %v654
      %v672 = vsub.f32 %v608, %v659
      %v673 = vsub.f32 %v613, %v664
      %v674 = vsub.f32 %v616, %v669
      %v675 = vmul.f32 %v671, 1.442695
      %v676 = vpow.pop %v675
      %v677 = vmul.f32 %v672, 1.442695
      %v678 = vpow.pop %v677
      %v679 = vmul.f32 %v673, 1.442695
      %v680 = vpow.pop %v679
      %v681 = vmul.f32 %v674, 1.442695
      %v682 = vpow.pop %v681
      %v683 = vld [vmem:[#allocation3] sm:$0xff]
      %v684 = vld [vmem:[#allocation3 + $0x8] sm:$0xff]
      %v685 = vld [vmem:[#allocation3 + $0x10] sm:$0xff]
      %v686 = vld [vmem:[#allocation3 + $0x18] sm:$0xff]
      %v687 = vmul.f32 %v644, %v683
      %v688 = vmul.f32 %v646, %v684
      %v689 = vmul.f32 %v648, %v685
      %v690 = vmul.f32 %v650, %v686
      %v691 = vsel %vm498, %v676, 0.0
      %692 = vadd.xlane.f32.xlu0 %v691
      %v693 = vpop.xlane.xlu0 %692
      %v694 = vsel %vm498, %v678, 0.0
      %695 = vadd.xlane.f32.xlu0 %v694
      %v696 = vpop.xlane.xlu0 %695
      %v697 = vsel %vm498, %v680, 0.0
      %698 = vadd.xlane.f32.xlu0 %v697
      %v699 = vpop.xlane.xlu0 %698
      %v700 = vsel %vm498, %v682, 0.0
      %701 = vadd.xlane.f32.xlu0 %v700
      %v702 = vpop.xlane.xlu0 %701
      %v703 = vadd.f32 %v687, %v693
      %v704 = vadd.f32 %v688, %v696
      %v705 = vadd.f32 %v689, %v699
      %v706 = vadd.f32 %v690, %v702
      %vm707 = vcmask 7168
      %708 = vst.msk [vmem:[#allocation3] sm:$0xff] %vm707, %v703
      %709 = vst.msk [vmem:[#allocation3 + $0x8] sm:$0xff] %vm707, %v704
      %710 = vst.msk [vmem:[#allocation3 + $0x10] sm:$0xff] %vm707, %v705
      %711 = vst.msk [vmem:[#allocation3 + $0x18] sm:$0xff] %vm707, %v706
      %v712 = vld [vmem:[#allocation4] sm:$0xff]
      %v713 = vld [vmem:[#allocation4 + $0x8] sm:$0xff]
      %v714 = vld [vmem:[#allocation4 + $0x10] sm:$0xff]
      %v715 = vld [vmem:[#allocation4 + $0x18] sm:$0xff]
      %717 = vset.pattern.permute.xlu0 0
      %718 = vperm.xlu0 %717, %v644
      %v719 = vpop.permute.xlu0 %718
      %722 = vset.pattern.permute.xlu0 0
      %723 = vperm.xlu0 %722, %v646
      %v724 = vpop.permute.xlu0 %723
      %727 = vset.pattern.permute.xlu0 0
      %728 = vperm.xlu0 %727, %v648
      %v729 = vpop.permute.xlu0 %728
      %732 = vset.pattern.permute.xlu0 0
      %733 = vperm.xlu0 %732, %v650
      %v734 = vpop.permute.xlu0 %733
      %v736 = vmul.f32 %v719, %v712
      %v737 = vmul.f32 %v724, %v713
      %v738 = vmul.f32 %v729, %v714
      %v739 = vmul.f32 %v734, %v715
      %v740 = vpack.c.bf16 %v678, %v676
      %v741 = vpack.c.bf16 %v682, %v680
      %v743 = vsel %vm498, %v740, 0
      %v746 = vsel %vm498, %v741, 0
      %748 = vmatprep.subr.bf16.mxu0 0
      %749 = vmatpush1.bf16.msra.mxu0 %v473
      %750 = vmatprep.subr.bf16.mxu0 0
      %751 = vmatpush1.bf16.msra.mxu0 %v474
      %752 = vmatprep.subr.bf16.mxu0 0
      %753 = vmatpush1.bf16.msra.mxu0 0
      %754 = vmatprep.subr.bf16.mxu0 0
      %755 = vmatpush1.bf16.msra.mxu0 0
      %756 = vmatprep.subr.bf16.mxu0 0
      %757 = vmatpush1.bf16.msra.mxu0 0
      %758 = vmatprep.subr.bf16.mxu0 0
      %759 = vmatpush1.bf16.msra.mxu0 0
      %760 = vmatprep.subr.bf16.mxu0 0
      %761 = vmatpush1.bf16.msra.mxu0 0
      %762 = vmatprep.subr.bf16.mxu0 0
      %763 = vmatpush1.bf16.msra.mxu0 0
      %764 = vmatprep.subr.bf16.mxu0 0
      %765 = vmatpush1.bf16.msra.mxu0 0
      %766 = vmatprep.subr.bf16.mxu0 0
      %767 = vmatpush1.bf16.msra.mxu0 0
      %768 = vmatprep.subr.bf16.mxu0 0
      %769 = vmatpush1.bf16.msra.mxu0 0
      %770 = vmatprep.subr.bf16.mxu0 0
      %771 = vmatpush1.bf16.msra.mxu0 0
      %772 = vmatprep.subr.bf16.mxu0 0
      %773 = vmatpush1.bf16.msra.mxu0 0
      %774 = vmatprep.subr.bf16.mxu0 0
      %775 = vmatpush1.bf16.msra.mxu0 0
      %776 = vmatprep.subr.bf16.mxu0 0
      %777 = vmatpush1.bf16.msra.mxu0 0
      %778 = vmatprep.subr.bf16.mxu0 0
      %779 = vmatpush1.bf16.msra.mxu0 0
      %780 = vmatprep.mubr.bf16.mxu0 0
      %781 = vmatmul.mubr.bf16.gmra.mrb[0].mxu0 %v743
      %v782 = vpop.f32.mrb[0].mxu0
      %v783 = vadd.f32 0.0, %v782
      %v784 = vpop.f32.mrb[0].mxu0
      %v785 = vpop.f32.mrb[0].mxu0
      %v786 = vadd.f32 0.0, %v785
      %v787 = vpop.f32.mrb[0].mxu0
      %788 = vmatprep.mubr.bf16.mxu0 0
      %789 = vmatmul.mubr.bf16.gmra.mrb[0].mxu0 %v746
      %v790 = vpop.f32.mrb[0].mxu0
      %v791 = vadd.f32 0.0, %v790
      %v792 = vpop.f32.mrb[0].mxu0
      %v793 = vpop.f32.mrb[0].mxu0
      %v794 = vadd.f32 0.0, %v793
      %v795 = vpop.f32.mrb[0].mxu0
      %796 = vdwg.mxu0
      %v797 = vadd.f32 %v736, %v783
      %v798 = vadd.f32 %v737, %v786
      %v799 = vadd.f32 %v738, %v791
      %v800 = vadd.f32 %v739, %v794
      %801 = vst.msk [vmem:[#allocation4] sm:$0xff] %vm498, %v797
      %802 = vst.msk [vmem:[#allocation4 + $0x8] sm:$0xff] %vm498, %v798
      %803 = vst.msk [vmem:[#allocation4 + $0x10] sm:$0xff] %vm498, %v799
      %804 = vst.msk [vmem:[#allocation4 + $0x18] sm:$0xff] %vm498, %v800
      %805 = vst.msk [vmem:[#allocation2] sm:$0xff] %vm707, %v635
      %806 = vst.msk [vmem:[#allocation2 + $0x8] sm:$0xff] %vm707, %v636
      %807 = vst.msk [vmem:[#allocation2 + $0x10] sm:$0xff] %vm707, %v637
      %808 = vst.msk [vmem:[#allocation2 + $0x18] sm:$0xff] %vm707, %v638
      %p809 = scmp.eq.s32.totalorder %s26, 1
      // Predicated region
      $region53: #{tpu_custom_call.1} parent=47 // pred_check
        %p810 = pneg %p809
      $region54: #{tpu_custom_call.1} parent=47 // pred_check_branch
        %812 = sbr.rel (%p810) target = $region56
      $region55: #{tpu_custom_call.1} parent=47 // pred_region
        %s813 = sld [smem:[#allocation6]]
        %v814 = vld [vmem:[#allocation3] sm:$0xff]
        %v815 = vld [vmem:[#allocation3 + $0x8] sm:$0xff]
        %v816 = vld [vmem:[#allocation3 + $0x10] sm:$0xff]
        %v817 = vld [vmem:[#allocation3 + $0x18] sm:$0xff]
        %v818 = vrcp.pop %v814
        %v819 = vrcp.pop %v815
        %v820 = vrcp.pop %v816
        %v821 = vrcp.pop %v817
        %v822 = vld [vmem:[#allocation4] sm:$0xff]
        %v823 = vld [vmem:[#allocation4 + $0x8] sm:$0xff]
        %v824 = vld [vmem:[#allocation4 + $0x10] sm:$0xff]
        %v825 = vld [vmem:[#allocation4 + $0x18] sm:$0xff]
        %827 = vset.pattern.permute.xlu0 0
        %828 = vperm.xlu0 %827, %v818
        %v829 = vpop.permute.xlu0 %828
        %832 = vset.pattern.permute.xlu0 0
        %833 = vperm.xlu0 %832, %v819
        %v834 = vpop.permute.xlu0 %833
        %837 = vset.pattern.permute.xlu0 0
        %838 = vperm.xlu0 %837, %v820
        %v839 = vpop.permute.xlu0 %838
        %842 = vset.pattern.permute.xlu0 0
        %843 = vperm.xlu0 %842, %v821
        %v844 = vpop.permute.xlu0 %843
        %v846 = vmul.f32 %v822, %v829
        %v847 = vmul.f32 %v823, %v834
        %v848 = vmul.f32 %v824, %v839
        %v849 = vmul.f32 %v825, %v844
        %v850 = vstv %s813
        %v851 = vmul.f32 %v850, %v846
        %v852 = vmul.f32 %v850, %v847
        %v853 = vmul.f32 %v850, %v848
        %v854 = vmul.f32 %v850, %v849
        %v855 = vld [vmem:[%s340] sm:$0xff]
        %v856 = vld [vmem:[%s340 + $0x8] sm:$0xff]
        %v857 = vld [vmem:[%s340 + $0x10] sm:$0xff]
        %v858 = vld [vmem:[%s340 + $0x18] sm:$0xff]
        %v859 = vadd.f32 %v851, %v855
        %v860 = vadd.f32 %v852, %v856
        %v861 = vadd.f32 %v853, %v857
        %v862 = vadd.f32 %v854, %v858
        %863 = vst.msk [vmem:[%s360] sm:$0xff] %vm498, %v859
        %864 = vst.msk [vmem:[%s360 + $0x8] sm:$0xff] %vm498, %v860
        %865 = vst.msk [vmem:[%s360 + $0x10] sm:$0xff] %vm498, %v861
        %866 = vst.msk [vmem:[%s360 + $0x18] sm:$0xff] %vm498, %v862
      $region56: #{tpu_custom_call.1} parent=47 // pred_fallthru
        _
      %s867 = smul.u32 4, %s25
      %p868 = scmp.lt.s32.totalorder %s24, 1
      %s869 = scalar_select %p868, %s24, 1
      %p870 = scmp.lt.s32.totalorder %s867, 7
      %s871 = scalar_select %p870, %s867, 7
      %s872 = smul.addr %s869, 8
      %s873 = sadd.s32 %s871, %s872
      %s874 = smul.addr %s873, 8
      %s875 = scalar_lea.vmem %s7, %s874
      // Predicated region
      $region57: #{tpu_custom_call.1} parent=47 // pred_check
        %p876 = pneg %p219
      $region58: #{tpu_custom_call.1} parent=47 // pred_check_branch
        %878 = sbr.rel (%p876) target = $region60
      $region59: #{tpu_custom_call.1} parent=47 // pred_region
        %s879 = smul.u32 4, %s25
      $region60: #{tpu_custom_call.1} parent=47 // pred_fallthru
        _
    $region48: #{tpu_custom_call.1} parent=5 // pred_fallthru
      _
    %p880 = scmp.le.s32.totalorder 2, %s14
    // Predicated region
    $region61: #{tpu_custom_call.1} parent=5 // pred_check
      %p881 = pneg %p880
    $region62: #{tpu_custom_call.1} parent=5 // pred_check_branch
      %883 = sbr.rel (%p881) target = $region64
    $region63: #{tpu_custom_call.1} parent=5 // pred_region
      %s884 = ssub.s32 %s14, 2
      // Predicated region
      $region65: #{tpu_custom_call.1} parent=63 // pred_check
        %p885 = pneg %p225
      $region66: #{tpu_custom_call.1} parent=63 // pred_check_branch
        %887 = sbr.rel (%p885) target = $region68
      $region67: #{tpu_custom_call.1} parent=63 // pred_region
        %s888 = smul.u32 4, %s28
        %p889 = scmp.lt.s32.totalorder %s27, 1
        %s890 = scalar_select %p889, %s27, 1
        %p891 = scmp.lt.s32.totalorder %s888, 7
        %s892 = scalar_select %p891, %s888, 7
        %s893 = smul.addr %s890, 8
        %s894 = sadd.s32 %s892, %s893
        %s895 = smul.addr %s894, 8
        %s896 = scalar_lea.vmem %s7, %s895
      $region68: #{tpu_custom_call.1} parent=63 // pred_fallthru
        _
    $region64: #{tpu_custom_call.1} parent=5 // pred_fallthru
      _
  $region6: #{tpu_custom_call.1} parent=0 // loop_footer
    %s18 = sadd.s32 1, %s14
  $region7: #{tpu_custom_call.1} parent=0 // loop_footer_branch
    %13 = sbr.rel target = $region3
  $region8: #{tpu_custom_call.1} parent=0 // loop_exit
    _

</llo_original>
